<compile_context>
chip_gen: v7x
topology: tpu7x:2x2x1
jax: 0.10.0
libtpu: 0.0.40
codegen_flags: <defaults>
</compile_context>

<pallas_src>
import functools

import jax
import jax.numpy as jnp
from jax.experimental import pallas as pl
from jax.experimental.pallas import tpu as pltpu

_LANE = 128


# ---------------------------------------------------------------------------
# Pallas kernel: one batch tile of the MLP, feature-major activations.
#   x_ref  : [in_dim, TB]  f32
#   wN_ref : [out, in]     bf16 (PyTorch layout)
#   bN_ref : [out, 1]      f32
#   out_ref: [1, TB]       f32  (lane-dense value row)
# ---------------------------------------------------------------------------
def critic_kernel(x_ref,
                  w1_ref, b1_ref,
                  w2_ref, b2_ref,
                  w3_ref, b3_ref,
                  w4_ref, b4_ref,
                  out_ref):
    bf16 = jnp.bfloat16

    x = x_ref[...].astype(bf16)                                           # [in_dim, TB]

    # fc1 + ReLU  (MXU dot in bf16, f32 accumulate; bias/ReLU in f32 on VPU)
    h1 = jnp.dot(w1_ref[...], x, preferred_element_type=jnp.float32)     # [64, TB]
    h1 = jnp.maximum(h1 + b1_ref[...], 0.0)

    # fc2 + ReLU
    h2 = jnp.dot(w2_ref[...], h1.astype(bf16),
                 preferred_element_type=jnp.float32)                      # [128, TB]
    h2 = jnp.maximum(h2 + b2_ref[...], 0.0)

    # fc3 + ReLU
    h3 = jnp.dot(w3_ref[...], h2.astype(bf16),
                 preferred_element_type=jnp.float32)                      # [64, TB]
    h3 = jnp.maximum(h3 + b3_ref[...], 0.0)

    # fc_out (value head): [1, 64] @ [64, TB] -> lane-dense [1, TB] row.
    v = jnp.dot(w4_ref[...], h3.astype(bf16),
                preferred_element_type=jnp.float32)                       # [1, TB]
    out_ref[...] = (v + b4_ref[...]).astype(out_ref.dtype)


def _round_up(x, m):
    return ((x + m - 1) // m) * m


def _choose_tile(batch, block_b):
    """Pick the batch tile TB (multiple of 128) and the padded batch size.

    TB is clamped so that large batches produce at least 2 grid blocks
    (both v7x TensorCores get work via the "parallel" axis); small batches
    collapse to a single 128-lane block.
    """
    b_pad = _round_up(max(batch, 1), _LANE)
    half = _round_up(-(-b_pad // 2), _LANE)          # ceil(b_pad/2) rounded to lanes
    tb = min(block_b, max(_LANE, half))
    b_pad = _round_up(b_pad, tb)
    return tb, b_pad


@functools.partial(jax.jit, static_argnames=("block_b",))
def critic_forward(state, params, *, block_b=2048):
    """Critic forward pass on TPU via pallas_call.

    state : [B, in_dim] float32
    params: dict with w1..w4 in PyTorch [out, in] layout (f32 masters) and
            biases as [out, 1] columns.
    returns [B, 1] float32 state values (matches the PyTorch module).
    """
    B, in_dim = state.shape
    assert block_b % _LANE == 0, "block_b must be a multiple of 128"
    TB, B_pad = _choose_tile(B, block_b)
    n_blocks = B_pad // TB

    # Feature-major HBM layout for the kernel: [in_dim, B_pad].  Under jit the
    # transpose + pad fuse into the single (tiny: 4*in_dim*B_pad bytes) op that
    # materializes the kernel input; for very large rollouts the caller can
    # materialize this layout upstream instead.
    x_t = state.T
    if B_pad != B:
        x_t = jnp.pad(x_t, ((0, 0), (0, B_pad - B)))

    # bf16 copies of the weights for the MXU (biases stay f32 for the VPU).
    w1 = params["w1"].astype(jnp.bfloat16)
    w2 = params["w2"].astype(jnp.bfloat16)
    w3 = params["w3"].astype(jnp.bfloat16)
    w4 = params["w4"].astype(jnp.bfloat16)
    b1, b2, b3, b4 = params["b1"], params["b2"], params["b3"], params["b4"]

    def _resident_spec(shape):
        # Constant block index -> operand stays resident in VMEM across steps.
        return pl.BlockSpec(shape, lambda i: (0, 0))

    in_specs = [
        pl.BlockSpec((in_dim, TB), lambda i: (0, i)),     # x: tiled over batch (lanes)
        _resident_spec(w1.shape), _resident_spec(b1.shape),
        _resident_spec(w2.shape), _resident_spec(b2.shape),
        _resident_spec(w3.shape), _resident_spec(b3.shape),
        _resident_spec(w4.shape), _resident_spec(b4.shape),
    ]
    out_specs = pl.BlockSpec((1, TB), lambda i: (0, i))    # lane-dense value row

    flops = 2 * B_pad * (in_dim * 64 + 64 * 128 + 128 * 64 + 64)
    bytes_accessed = (4 * (in_dim * B_pad + B_pad)                      # x + out (f32)
                      + 2 * (64 * in_dim + 128 * 64 + 64 * 128 + 64)    # bf16 weights
                      + 4 * (64 + 128 + 64 + 1))                        # f32 biases

    out_row = pl.pallas_call(
        critic_kernel,
        grid=(n_blocks,),
        in_specs=in_specs,
        out_specs=out_specs,
        out_shape=jax.ShapeDtypeStruct((1, B_pad), jnp.float32),
        compiler_params=pltpu.CompilerParams(
            dimension_semantics=("parallel",)),            # megacore sharding on v7x
        cost_estimate=pl.CostEstimate(flops=flops,
                                      transcendentals=0,
                                      bytes_accessed=bytes_accessed),
    )(x_t,
      w1, b1, w2, b2, w3, b3, w4, b4)

    return out_row[0, :B].reshape(B, 1)


# ---------------------------------------------------------------------------
# Deterministic parameter init (mirrors initialize_orthogonal in the module):
# orthogonal weights with the given gain, zero biases.  PyTorch [out, in]
# layout; biases stored as [out, 1] columns for the feature-major kernel.
# ---------------------------------------------------------------------------
def _orthogonal(key, out_features, in_features, gain):
    # QR-based orthogonal init (same recipe as torch.nn.init.orthogonal_).
    a = jax.random.normal(key, (out_features, in_features), dtype=jnp.float32)
    flat = a if out_features >= in_features else a.T
    q, r = jnp.linalg.qr(flat)
    q = q * jnp.sign(jnp.diag(r))                   # make decomposition unique
    if out_features < in_features:
        q = q.T
    return gain * q[:out_features, :in_features]    # PyTorch layout [out, in]


def make_critic_params(key, in_dim):
    k1, k2, k3, k4 = jax.random.split(key, 4)
    g = 2.0 ** 0.5
    return {
        "w1": _orthogonal(k1, 64, in_dim, g),   "b1": jnp.zeros((64, 1),  jnp.float32),
        "w2": _orthogonal(k2, 128, 64, g),      "b2": jnp.zeros((128, 1), jnp.float32),
        "w3": _orthogonal(k3, 64, 128, g),      "b3": jnp.zeros((64, 1),  jnp.float32),
        "w4": _orthogonal(k4, 1, 64, 1.0),      "b4": jnp.zeros((1, 1),   jnp.float32),
    }


def critic_reference(state, params):
    """Full-f32 reference of the PyTorch module (x @ W.T + b chains)."""
    h = jnp.maximum(state @ params["w1"].T + params["b1"].T, 0.0)
    h = jnp.maximum(h @ params["w2"].T + params["b2"].T, 0.0)
    h = jnp.maximum(h @ params["w3"].T + params["b3"].T, 0.0)
    return h @ params["w4"].T + params["b4"].T


if __name__ == "__main__":
    key = jax.random.PRNGKey(0)
    k_params, k_state = jax.random.split(key)

    in_dim = 3          # Pendulum-v1 observation dim
    batch = 8           # small batch -> single 128-lane block

    params = make_critic_params(k_params, in_dim)
    state = jax.random.normal(k_state, (batch, in_dim), dtype=jnp.float32)

    value = jax.block_until_ready(critic_forward(state, params))
    ref = critic_reference(state, params)
    assert value.shape == (batch, 1)
    # bf16 MXU operands (f32 accumulate) vs. the f32 reference -> loosened tol.
    assert jnp.allclose(value, ref, atol=0.15, rtol=0.05), "mismatch vs reference"

    # Also exercise the tiled multi-block path (ragged batch, 2 grid steps so
    # the v7x dual-TC sharding path is covered as well).
    big_state = jax.random.normal(k_state, (260, in_dim), dtype=jnp.float32)
    big_value = jax.block_until_ready(critic_forward(big_state, params))
    big_ref = critic_reference(big_state, params)
    assert big_value.shape == (260, 1)
    assert jnp.allclose(big_value, big_ref, atol=0.15, rtol=0.05), "mismatch (tiled path)"

    print("KERNEL_OK")
</pallas_src>

<mosaic_0001>
module attributes {stable_mosaic.version = 11 : i64} {
  func.func @critic_kernel(%arg0: i32, %arg1: memref<3x128xf32, #tpu.memory_space<vmem>>, %arg2: memref<64x3xbf16, #tpu.memory_space<vmem>>, %arg3: memref<64x1xf32, #tpu.memory_space<vmem>>, %arg4: memref<128x64xbf16, #tpu.memory_space<vmem>>, %arg5: memref<128x1xf32, #tpu.memory_space<vmem>>, %arg6: memref<64x128xbf16, #tpu.memory_space<vmem>>, %arg7: memref<64x1xf32, #tpu.memory_space<vmem>>, %arg8: memref<1x64xbf16, #tpu.memory_space<vmem>>, %arg9: memref<1x1xf32, #tpu.memory_space<vmem>>, %arg10: memref<1x128xf32, #tpu.memory_space<vmem>>) attributes {dimension_semantics = [#tpu.dimension_semantics<parallel>], iteration_bounds = array<i64: 1>, scalar_prefetch = 0 : i64, scratch_operands = 0 : i64, tpu.core_type = #tpu.core_type<tc>, window_params = [{transform_indices = @transform_0, window_bounds = array<i64: 3, 128>}, {pipeline_mode = #tpu.pipeline_mode<synchronous>, transform_indices = @transform_1, window_bounds = array<i64: 64, 3>}, {pipeline_mode = #tpu.pipeline_mode<synchronous>, transform_indices = @transform_2, window_bounds = array<i64: 64, 1>}, {pipeline_mode = #tpu.pipeline_mode<synchronous>, transform_indices = @transform_3, window_bounds = array<i64: 128, 64>}, {pipeline_mode = #tpu.pipeline_mode<synchronous>, transform_indices = @transform_4, window_bounds = array<i64: 128, 1>}, {pipeline_mode = #tpu.pipeline_mode<synchronous>, transform_indices = @transform_5, window_bounds = array<i64: 64, 128>}, {pipeline_mode = #tpu.pipeline_mode<synchronous>, transform_indices = @transform_6, window_bounds = array<i64: 64, 1>}, {pipeline_mode = #tpu.pipeline_mode<synchronous>, transform_indices = @transform_7, window_bounds = array<i64: 1, 64>}, {pipeline_mode = #tpu.pipeline_mode<synchronous>, transform_indices = @transform_8, window_bounds = array<i64: 1, 1>}, {transform_indices = @transform_9, window_bounds = array<i64: 1, 128>}]} {
    %c0 = arith.constant 0 : index
    %c0_0 = arith.constant 0 : index
    %0 = vector.load %arg1[%c0, %c0_0] : memref<3x128xf32, #tpu.memory_space<vmem>>, vector<3x128xf32>
    %1 = arith.truncf %0 : vector<3x128xf32> to vector<3x128xbf16>
    %c0_1 = arith.constant 0 : index
    %c0_2 = arith.constant 0 : index
    %2 = vector.load %arg2[%c0_1, %c0_2] : memref<64x3xbf16, #tpu.memory_space<vmem>>, vector<64x3xbf16>
    %cst = arith.constant dense<0.000000e+00> : vector<64x128xf32>
    %3 = tpu.matmul %2, %1, %cst {dimension_numbers = #tpu.dot_dimension_numbers<[1], [0], [0], [1], [0, 0, 1, 1], [], []>} : vector<64x3xbf16>, vector<3x128xbf16>, vector<64x128xf32> -> vector<64x128xf32>
    %c0_3 = arith.constant 0 : index
    %c0_4 = arith.constant 0 : index
    %4 = vector.load %arg3[%c0_3, %c0_4] : memref<64x1xf32, #tpu.memory_space<vmem>>, vector<64x1xf32>
    %5 = vector.broadcast %4 : vector<64x1xf32> to vector<64x128xf32>
    %6 = arith.addf %3, %5 : vector<64x128xf32>
    %cst_5 = arith.constant 0.000000e+00 : f32
    %7 = vector.broadcast %cst_5 : f32 to vector<64x128xf32>
    %8 = arith.maximumf %6, %7 : vector<64x128xf32>
    %c0_6 = arith.constant 0 : index
    %c0_7 = arith.constant 0 : index
    %9 = vector.load %arg4[%c0_6, %c0_7] : memref<128x64xbf16, #tpu.memory_space<vmem>>, vector<128x64xbf16>
    %10 = arith.truncf %8 : vector<64x128xf32> to vector<64x128xbf16>
    %cst_8 = arith.constant dense<0.000000e+00> : vector<128x128xf32>
    %11 = tpu.matmul %9, %10, %cst_8 {dimension_numbers = #tpu.dot_dimension_numbers<[1], [0], [0], [1], [0, 0, 1, 1], [], []>} : vector<128x64xbf16>, vector<64x128xbf16>, vector<128x128xf32> -> vector<128x128xf32>
    %c0_9 = arith.constant 0 : index
    %c0_10 = arith.constant 0 : index
    %12 = vector.load %arg5[%c0_9, %c0_10] : memref<128x1xf32, #tpu.memory_space<vmem>>, vector<128x1xf32>
    %13 = vector.broadcast %12 : vector<128x1xf32> to vector<128x128xf32>
    %14 = arith.addf %11, %13 : vector<128x128xf32>
    %cst_11 = arith.constant 0.000000e+00 : f32
    %15 = vector.broadcast %cst_11 : f32 to vector<128x128xf32>
    %16 = arith.maximumf %14, %15 : vector<128x128xf32>
    %c0_12 = arith.constant 0 : index
    %c0_13 = arith.constant 0 : index
    %17 = vector.load %arg6[%c0_12, %c0_13] : memref<64x128xbf16, #tpu.memory_space<vmem>>, vector<64x128xbf16>
    %18 = arith.truncf %16 : vector<128x128xf32> to vector<128x128xbf16>
    %cst_14 = arith.constant dense<0.000000e+00> : vector<64x128xf32>
    %19 = tpu.matmul %17, %18, %cst_14 {dimension_numbers = #tpu.dot_dimension_numbers<[1], [0], [0], [1], [0, 0, 1, 1], [], []>} : vector<64x128xbf16>, vector<128x128xbf16>, vector<64x128xf32> -> vector<64x128xf32>
    %c0_15 = arith.constant 0 : index
    %c0_16 = arith.constant 0 : index
    %20 = vector.load %arg7[%c0_15, %c0_16] : memref<64x1xf32, #tpu.memory_space<vmem>>, vector<64x1xf32>
    %21 = vector.broadcast %20 : vector<64x1xf32> to vector<64x128xf32>
    %22 = arith.addf %19, %21 : vector<64x128xf32>
    %cst_17 = arith.constant 0.000000e+00 : f32
    %23 = vector.broadcast %cst_17 : f32 to vector<64x128xf32>
    %24 = arith.maximumf %22, %23 : vector<64x128xf32>
    %c0_18 = arith.constant 0 : index
    %c0_19 = arith.constant 0 : index
    %25 = vector.load %arg8[%c0_18, %c0_19] : memref<1x64xbf16, #tpu.memory_space<vmem>>, vector<1x64xbf16>
    %26 = arith.truncf %24 : vector<64x128xf32> to vector<64x128xbf16>
    %cst_20 = arith.constant dense<0.000000e+00> : vector<1x128xf32>
    %27 = tpu.matmul %25, %26, %cst_20 {dimension_numbers = #tpu.dot_dimension_numbers<[1], [0], [0], [1], [0, 0, 1, 1], [], []>} : vector<1x64xbf16>, vector<64x128xbf16>, vector<1x128xf32> -> vector<1x128xf32>
    %c0_21 = arith.constant 0 : index
    %c0_22 = arith.constant 0 : index
    %28 = vector.load %arg9[%c0_21, %c0_22] : memref<1x1xf32, #tpu.memory_space<vmem>>, vector<1x1xf32>
    %29 = vector.broadcast %28 : vector<1x1xf32> to vector<1x128xf32>
    %30 = arith.addf %27, %29 : vector<1x128xf32>
    %c0_23 = arith.constant 0 : index
    %c0_24 = arith.constant 0 : index
    %31 = vector.load %arg10[%c0_23, %c0_24] : memref<1x128xf32, #tpu.memory_space<vmem>>, vector<1x128xf32>
    tpu.vector_store %arg10[%c0_23, %c0_24], %30 {strides = array<i32>} : memref<1x128xf32, #tpu.memory_space<vmem>>, vector<1x128xf32>,
    return
  }
  func.func @transform_0(%arg0: i32) -> (i32, i32) {
    %c0_i32 = arith.constant 0 : i32
    %c0_i32_0 = arith.constant 0 : i32
    return %c0_i32, %arg0 : i32, i32
  }
  func.func @transform_1(%arg0: i32) -> (i32, i32) {
    %c0_i32 = arith.constant 0 : i32
    %c0_i32_0 = arith.constant 0 : i32
    %c0_i32_1 = arith.constant 0 : i32
    return %c0_i32, %c0_i32_0 : i32, i32
  }
  func.func @transform_2(%arg0: i32) -> (i32, i32) {
    %c0_i32 = arith.constant 0 : i32
    %c0_i32_0 = arith.constant 0 : i32
    %c0_i32_1 = arith.constant 0 : i32
    return %c0_i32, %c0_i32_0 : i32, i32
  }
  func.func @transform_3(%arg0: i32) -> (i32, i32) {
    %c0_i32 = arith.constant 0 : i32
    %c0_i32_0 = arith.constant 0 : i32
    %c0_i32_1 = arith.constant 0 : i32
    return %c0_i32, %c0_i32_0 : i32, i32
  }
  func.func @transform_4(%arg0: i32) -> (i32, i32) {
    %c0_i32 = arith.constant 0 : i32
    %c0_i32_0 = arith.constant 0 : i32
    %c0_i32_1 = arith.constant 0 : i32
    return %c0_i32, %c0_i32_0 : i32, i32
  }
  func.func @transform_5(%arg0: i32) -> (i32, i32) {
    %c0_i32 = arith.constant 0 : i32
    %c0_i32_0 = arith.constant 0 : i32
    %c0_i32_1 = arith.constant 0 : i32
    return %c0_i32, %c0_i32_0 : i32, i32
  }
  func.func @transform_6(%arg0: i32) -> (i32, i32) {
    %c0_i32 = arith.constant 0 : i32
    %c0_i32_0 = arith.constant 0 : i32
    %c0_i32_1 = arith.constant 0 : i32
    return %c0_i32, %c0_i32_0 : i32, i32
  }
  func.func @transform_7(%arg0: i32) -> (i32, i32) {
    %c0_i32 = arith.constant 0 : i32
    %c0_i32_0 = arith.constant 0 : i32
    %c0_i32_1 = arith.constant 0 : i32
    return %c0_i32, %c0_i32_0 : i32, i32
  }
  func.func @transform_8(%arg0: i32) -> (i32, i32) {
    %c0_i32 = arith.constant 0 : i32
    %c0_i32_0 = arith.constant 0 : i32
    %c0_i32_1 = arith.constant 0 : i32
    return %c0_i32, %c0_i32_0 : i32, i32
  }
  func.func @transform_9(%arg0: i32) -> (i32, i32) {
    %c0_i32 = arith.constant 0 : i32
    %c0_i32_0 = arith.constant 0 : i32
    return %c0_i32, %arg0 : i32, i32
  }
}

</mosaic_0001>

<llo_original>
// kernel: critic_forward.1
$region0: #{critic_forward.1}
  #allocation0 [shape = 'u32[]', space=smem, size = 0x4, offset = 0x4, fixed_abs, tag = 'smem constant byte address 0x4 - core index']
  #allocation1 [shape = 'u32[144,128]{1,0:T(1,128)}', space=vmem, size = 0x12000, scoped, tag = 'internal scratch']
  #allocation2 [shape = 'f32[1,1]{1,0:T(1,128)S(1)}', space=vmem, size = 0x200, scoped, tag = 'scoped memory for critic_forward.1']
  %s0 = inlined_call_operand.vmem [shape: f32[3,128], index: 0, kind: input, shape index: {}]
  %s1 = inlined_call_operand.vmem [shape: bf16[64,3], index: 1, kind: input, shape index: {}]
  %s2 = inlined_call_operand.vmem [shape: f32[64,1], index: 2, kind: input, shape index: {}]
  %s3 = inlined_call_operand.vmem [shape: bf16[128,64], index: 3, kind: input, shape index: {}]
  %s4 = inlined_call_operand.vmem [shape: f32[128,1], index: 4, kind: input, shape index: {}]
  %s5 = inlined_call_operand.vmem [shape: bf16[64,128], index: 5, kind: input, shape index: {}]
  %s6 = inlined_call_operand.vmem [shape: f32[64,1], index: 6, kind: input, shape index: {}]
  %s7 = inlined_call_operand.vmem [shape: bf16[1,64], index: 7, kind: input, shape index: {}]
  %s8 = inlined_call_operand.<no memory space> [shape: f32[1,1], index: 8, kind: input, shape index: {}]
  %s9 = inlined_call_operand.vmem [shape: f32[1,128], index: 9, kind: output, shape index: {}]
  %s10 = sld [smem:[#allocation0]]
  $region46: #{critic_forward.1} parent=0
    _
  %s12 = ssub.s32 1, %s10
  %s13 = scalar_select 0, %s12, %s10
  %v14 = vstv %s8
  %15 = vst [vmem:[#allocation2] sm:$0x1] %v14
  // Predicated region
  $region2: #{critic_forward.1} parent=0 // pred_check
    _
  $region3: #{critic_forward.1} parent=0 // pred_check_branch
    %17 = sbr.rel (0) target = $region5
  $region4: #{critic_forward.1} parent=0 // pred_region
    _
  $region5: #{critic_forward.1} parent=0 // pred_fallthru
    _
  // Predicated region
  $region6: #{critic_forward.1} parent=0 // pred_check
    _
  $region7: #{critic_forward.1} parent=0 // pred_check_branch
    %19 = sbr.rel (0) target = $region9
  $region8: #{critic_forward.1} parent=0 // pred_region
    _
  $region9: #{critic_forward.1} parent=0 // pred_fallthru
    _
  // Predicated region
  $region10: #{critic_forward.1} parent=0 // pred_check
    _
  $region11: #{critic_forward.1} parent=0 // pred_check_branch
    %21 = sbr.rel (0) target = $region13
  $region12: #{critic_forward.1} parent=0 // pred_region
    _
  $region13: #{critic_forward.1} parent=0 // pred_fallthru
    _
  // Predicated region
  $region14: #{critic_forward.1} parent=0 // pred_check
    _
  $region15: #{critic_forward.1} parent=0 // pred_check_branch
    %23 = sbr.rel (0) target = $region17
  $region16: #{critic_forward.1} parent=0 // pred_region
    _
  $region17: #{critic_forward.1} parent=0 // pred_fallthru
    _
  // Predicated region
  $region18: #{critic_forward.1} parent=0 // pred_check
    _
  $region19: #{critic_forward.1} parent=0 // pred_check_branch
    %25 = sbr.rel (0) target = $region21
  $region20: #{critic_forward.1} parent=0 // pred_region
    _
  $region21: #{critic_forward.1} parent=0 // pred_fallthru
    _
  // Predicated region
  $region22: #{critic_forward.1} parent=0 // pred_check
    _
  $region23: #{critic_forward.1} parent=0 // pred_check_branch
    %27 = sbr.rel (0) target = $region25
  $region24: #{critic_forward.1} parent=0 // pred_region
    _
  $region25: #{critic_forward.1} parent=0 // pred_fallthru
    _
  // Predicated region
  $region26: #{critic_forward.1} parent=0 // pred_check
    _
  $region27: #{critic_forward.1} parent=0 // pred_check_branch
    %29 = sbr.rel (0) target = $region29
  $region28: #{critic_forward.1} parent=0 // pred_region
    _
  $region29: #{critic_forward.1} parent=0 // pred_fallthru
    _
  // Predicated region
  $region30: #{critic_forward.1} parent=0 // pred_check
    _
  $region31: #{critic_forward.1} parent=0 // pred_check_branch
    %31 = sbr.rel (0) target = $region33
  $region32: #{critic_forward.1} parent=0 // pred_region
    _
  $region33: #{critic_forward.1} parent=0 // pred_fallthru
    _
  // Predicated region
  $region34: #{critic_forward.1} parent=0 // pred_check
    _
  $region35: #{critic_forward.1} parent=0 // pred_check_branch
    %33 = sbr.rel (0) target = $region37
  $region36: #{critic_forward.1} parent=0 // pred_region
    _
  $region37: #{critic_forward.1} parent=0 // pred_fallthru
    _
  %v35 = vld [vmem:[%s0] sm:$0x7]
  %v36 = vpack.c.bf16 %v35, %v35
  %v37 = vld [vmem:[%s1] sm:$0xf]
  %v38 = vld [vmem:[%s1 + $0x4] sm:$0xf]
  %v39 = vld [vmem:[%s1 + $0x8] sm:$0xf]
  %v40 = vld [vmem:[%s1 + $0xc] sm:$0xf]
  %v41 = vld [vmem:[%s1 + $0x10] sm:$0xf]
  %v42 = vld [vmem:[%s1 + $0x14] sm:$0xf]
  %v43 = vld [vmem:[%s1 + $0x18] sm:$0xf]
  %v44 = vld [vmem:[%s1 + $0x1c] sm:$0xf]
  %v45 = vld [vmem:[%s2] sm:$0xff]
  %v46 = vld [vmem:[%s2 + $0x8] sm:$0xff]
  %v47 = vld [vmem:[%s2 + $0x10] sm:$0xff]
  %v48 = vld [vmem:[%s2 + $0x18] sm:$0xff]
  %v49 = vld [vmem:[%s2 + $0x20] sm:$0xff]
  %v50 = vld [vmem:[%s2 + $0x28] sm:$0xff]
  %v51 = vld [vmem:[%s2 + $0x30] sm:$0xff]
  %v52 = vld [vmem:[%s2 + $0x38] sm:$0xff]
  %54 = vset.pattern.permute.xlu0 0
  %55 = vperm.xlu0 %54, %v45
  %v56 = vpop.permute.xlu0 %55
  %59 = vset.pattern.permute.xlu0 0
  %60 = vperm.xlu0 %59, %v46
  %v61 = vpop.permute.xlu0 %60
  %64 = vset.pattern.permute.xlu0 0
  %65 = vperm.xlu0 %64, %v47
  %v66 = vpop.permute.xlu0 %65
  %69 = vset.pattern.permute.xlu0 0
  %70 = vperm.xlu0 %69, %v48
  %v71 = vpop.permute.xlu0 %70
  %74 = vset.pattern.permute.xlu0 0
  %75 = vperm.xlu0 %74, %v49
  %v76 = vpop.permute.xlu0 %75
  %79 = vset.pattern.permute.xlu0 0
  %80 = vperm.xlu0 %79, %v50
  %v81 = vpop.permute.xlu0 %80
  %84 = vset.pattern.permute.xlu0 0
  %85 = vperm.xlu0 %84, %v51
  %v86 = vpop.permute.xlu0 %85
  %89 = vset.pattern.permute.xlu0 0
  %90 = vperm.xlu0 %89, %v52
  %v91 = vpop.permute.xlu0 %90
  %v101 = vunpack.c.l.b16 %v37
  %v102 = vunpack.c.l.b16 %v38
  %v103 = vunpack.c.l.b16 %v39
  %v104 = vunpack.c.l.b16 %v40
  %v105 = vunpack.c.l.b16 %v41
  %v106 = vunpack.c.l.b16 %v42
  %v107 = vunpack.c.l.b16 %v43
  %v108 = vunpack.c.l.b16 %v44
  %v109 = vpack.c.b16 %v102, %v101
  %v110 = vpack.c.b16 %v104, %v103
  %v111 = vpack.c.b16 %v106, %v105
  %v112 = vpack.c.b16 %v108, %v107
  %vm113 = vcmask 23552
  %v115 = vsel %vm113, %v109, 0
  %v118 = vsel %vm113, %v110, 0
  %v121 = vsel %vm113, %v111, 0
  %v124 = vsel %vm113, %v112, 0
  %vm126 = vcmask 1040384
  %vm127 = vcmask 1041408
  %v128 = vsel %vm126, 4294967295, 65535
  %v129 = vsel %vm127, %v128, 0
  %v131 = vand.u32 %v36, %v129
  %133 = vmatprep.subr.bf16.mxu0 0
  %134 = vmatpush1.bf16.msra.mxu0 %v131
  %135 = vmatprep.subr.bf16.mxu0 0
  %136 = vmatpush1.bf16.msra.mxu0 0
  %137 = vmatprep.subr.bf16.mxu0 0
  %138 = vmatpush1.bf16.msra.mxu0 0
  %139 = vmatprep.subr.bf16.mxu0 0
  %140 = vmatpush1.bf16.msra.mxu0 0
  %141 = vmatprep.subr.bf16.mxu0 0
  %142 = vmatpush1.bf16.msra.mxu0 0
  %143 = vmatprep.subr.bf16.mxu0 0
  %144 = vmatpush1.bf16.msra.mxu0 0
  %145 = vmatprep.subr.bf16.mxu0 0
  %146 = vmatpush1.bf16.msra.mxu0 0
  %147 = vmatprep.subr.bf16.mxu0 0
  %148 = vmatpush1.bf16.msra.mxu0 0
  %149 = vmatprep.subr.bf16.mxu0 0
  %150 = vmatpush1.bf16.msra.mxu0 0
  %151 = vmatprep.subr.bf16.mxu0 0
  %152 = vmatpush1.bf16.msra.mxu0 0
  %153 = vmatprep.subr.bf16.mxu0 0
  %154 = vmatpush1.bf16.msra.mxu0 0
  %155 = vmatprep.subr.bf16.mxu0 0
  %156 = vmatpush1.bf16.msra.mxu0 0
  %157 = vmatprep.subr.bf16.mxu0 0
  %158 = vmatpush1.bf16.msra.mxu0 0
  %159 = vmatprep.subr.bf16.mxu0 0
  %160 = vmatpush1.bf16.msra.mxu0 0
  %161 = vmatprep.subr.bf16.mxu0 0
  %162 = vmatpush1.bf16.msra.mxu0 0
  %163 = vmatprep.subr.bf16.mxu0 0
  %164 = vmatpush1.bf16.msra.mxu0 0
  %165 = vmatprep.mubr.bf16.mxu0 0
  %166 = vmatmul.mubr.bf16.gmra.mrb[0].mxu0 %v115
  %v167 = vpop.f32.mrb[0].mxu0
  %v168 = vadd.f32 %v56, %v167
  %v169 = vpop.f32.mrb[0].mxu0
  %v170 = vpop.f32.mrb[0].mxu0
  %v171 = vadd.f32 %v61, %v170
  %v172 = vpop.f32.mrb[0].mxu0
  %173 = vmatprep.mubr.bf16.mxu0 0
  %174 = vmatmul.mubr.bf16.gmra.mrb[0].mxu0 %v118
  %v175 = vpop.f32.mrb[0].mxu0
  %v176 = vadd.f32 %v66, %v175
  %v177 = vpop.f32.mrb[0].mxu0
  %v178 = vpop.f32.mrb[0].mxu0
  %v179 = vadd.f32 %v71, %v178
  %v180 = vpop.f32.mrb[0].mxu0
  %181 = vmatprep.mubr.bf16.mxu0 0
  %182 = vmatmul.mubr.bf16.gmra.mrb[0].mxu0 %v121
  %v183 = vpop.f32.mrb[0].mxu0
  %v184 = vadd.f32 %v76, %v183
  %v185 = vpop.f32.mrb[0].mxu0
  %v186 = vpop.f32.mrb[0].mxu0
  %v187 = vadd.f32 %v81, %v186
  %v188 = vpop.f32.mrb[0].mxu0
  %189 = vmatprep.mubr.bf16.mxu0 0
  %190 = vmatmul.mubr.bf16.gmra.mrb[0].mxu0 %v124
  %v191 = vpop.f32.mrb[0].mxu0
  %v192 = vadd.f32 %v86, %v191
  %v193 = vpop.f32.mrb[0].mxu0
  %v194 = vpop.f32.mrb[0].mxu0
  %v195 = vadd.f32 %v91, %v194
  %v196 = vpop.f32.mrb[0].mxu0
  %197 = vdwg.mxu0
  %v198 = vmax.f32 %v168, 0.0
  %v199 = vmax.f32 %v171, 0.0
  %v200 = vmax.f32 %v176, 0.0
  %v201 = vmax.f32 %v179, 0.0
  %v202 = vmax.f32 %v184, 0.0
  %v203 = vmax.f32 %v187, 0.0
  %v204 = vmax.f32 %v192, 0.0
  %v205 = vmax.f32 %v195, 0.0
  %v206 = vld [vmem:[%s3] sm:$0xf]
  %v207 = vld [vmem:[%s3 + $0x4] sm:$0xf]
  %v208 = vld [vmem:[%s3 + $0x8] sm:$0xf]
  %v209 = vld [vmem:[%s3 + $0xc] sm:$0xf]
  %v210 = vld [vmem:[%s3 + $0x10] sm:$0xf]
  %v211 = vld [vmem:[%s3 + $0x14] sm:$0xf]
  %v212 = vld [vmem:[%s3 + $0x18] sm:$0xf]
  %v213 = vld [vmem:[%s3 + $0x1c] sm:$0xf]
  %v214 = vld [vmem:[%s3 + $0x20] sm:$0xf]
  %v215 = vld [vmem:[%s3 + $0x24] sm:$0xf]
  %v216 = vld [vmem:[%s3 + $0x28] sm:$0xf]
  %v217 = vld [vmem:[%s3 + $0x2c] sm:$0xf]
  %v218 = vld [vmem:[%s3 + $0x30] sm:$0xf]
  %v219 = vld [vmem:[%s3 + $0x34] sm:$0xf]
  %v220 = vld [vmem:[%s3 + $0x38] sm:$0xf]
  %v221 = vld [vmem:[%s3 + $0x3c] sm:$0xf]
  %v222 = vpack.c.bf16 %v199, %v198
  %v223 = vpack.c.bf16 %v201, %v200
  %v224 = vpack.c.bf16 %v203, %v202
  %v225 = vpack.c.bf16 %v205, %v204
  %v226 = vld [vmem:[%s4] sm:$0xff]
  %v227 = vld [vmem:[%s4 + $0x8] sm:$0xff]
  %v228 = vld [vmem:[%s4 + $0x10] sm:$0xff]
  %v229 = vld [vmem:[%s4 + $0x18] sm:$0xff]
  %v230 = vld [vmem:[%s4 + $0x20] sm:$0xff]
  %v231 = vld [vmem:[%s4 + $0x28] sm:$0xff]
  %v232 = vld [vmem:[%s4 + $0x30] sm:$0xff]
  %v233 = vld [vmem:[%s4 + $0x38] sm:$0xff]
  %v234 = vld [vmem:[%s4 + $0x40] sm:$0xff]
  %v235 = vld [vmem:[%s4 + $0x48] sm:$0xff]
  %v236 = vld [vmem:[%s4 + $0x50] sm:$0xff]
  %v237 = vld [vmem:[%s4 + $0x58] sm:$0xff]
  %v238 = vld [vmem:[%s4 + $0x60] sm:$0xff]
  %v239 = vld [vmem:[%s4 + $0x68] sm:$0xff]
  %v240 = vld [vmem:[%s4 + $0x70] sm:$0xff]
  %v241 = vld [vmem:[%s4 + $0x78] sm:$0xff]
  %243 = vset.pattern.permute.xlu0 0
  %244 = vperm.xlu0 %243, %v226
  %v245 = vpop.permute.xlu0 %244
  %248 = vset.pattern.permute.xlu0 0
  %249 = vperm.xlu0 %248, %v227
  %v250 = vpop.permute.xlu0 %249
  %253 = vset.pattern.permute.xlu0 0
  %254 = vperm.xlu0 %253, %v228
  %v255 = vpop.permute.xlu0 %254
  %258 = vset.pattern.permute.xlu0 0
  %259 = vperm.xlu0 %258, %v229
  %v260 = vpop.permute.xlu0 %259
  %263 = vset.pattern.permute.xlu0 0
  %264 = vperm.xlu0 %263, %v230
  %v265 = vpop.permute.xlu0 %264
  %268 = vset.pattern.permute.xlu0 0
  %269 = vperm.xlu0 %268, %v231
  %v270 = vpop.permute.xlu0 %269
  %273 = vset.pattern.permute.xlu0 0
  %274 = vperm.xlu0 %273, %v232
  %v275 = vpop.permute.xlu0 %274
  %278 = vset.pattern.permute.xlu0 0
  %279 = vperm.xlu0 %278, %v233
  %v280 = vpop.permute.xlu0 %279
  %283 = vset.pattern.permute.xlu0 0
  %284 = vperm.xlu0 %283, %v234
  %v285 = vpop.permute.xlu0 %284
  %288 = vset.pattern.permute.xlu0 0
  %289 = vperm.xlu0 %288, %v235
  %v290 = vpop.permute.xlu0 %289
  %293 = vset.pattern.permute.xlu0 0
  %294 = vperm.xlu0 %293, %v236
  %v295 = vpop.permute.xlu0 %294
  %298 = vset.pattern.permute.xlu0 0
  %299 = vperm.xlu0 %298, %v237
  %v300 = vpop.permute.xlu0 %299
  %303 = vset.pattern.permute.xlu0 0
  %304 = vperm.xlu0 %303, %v238
  %v305 = vpop.permute.xlu0 %304
  %308 = vset.pattern.permute.xlu0 0
  %309 = vperm.xlu0 %308, %v239
  %v310 = vpop.permute.xlu0 %309
  %313 = vset.pattern.permute.xlu0 0
  %314 = vperm.xlu0 %313, %v240
  %v315 = vpop.permute.xlu0 %314
  %318 = vset.pattern.permute.xlu0 0
  %319 = vperm.xlu0 %318, %v241
  %v320 = vpop.permute.xlu0 %319
  %v338 = vunpack.c.l.b16 %v206
  %v339 = vunpack.c.l.b16 %v207
  %v340 = vunpack.c.l.b16 %v208
  %v341 = vunpack.c.l.b16 %v209
  %v342 = vunpack.c.l.b16 %v210
  %v343 = vunpack.c.l.b16 %v211
  %v344 = vunpack.c.l.b16 %v212
  %v345 = vunpack.c.l.b16 %v213
  %v346 = vunpack.c.l.b16 %v214
  %v347 = vunpack.c.l.b16 %v215
  %v348 = vunpack.c.l.b16 %v216
  %v349 = vunpack.c.l.b16 %v217
  %v350 = vunpack.c.l.b16 %v218
  %v351 = vunpack.c.l.b16 %v219
  %v352 = vunpack.c.l.b16 %v220
  %v353 = vunpack.c.l.b16 %v221
  %v354 = vpack.c.b16 %v339, %v338
  %v355 = vpack.c.b16 %v341, %v340
  %v356 = vpack.c.b16 %v343, %v342
  %v357 = vpack.c.b16 %v345, %v344
  %v358 = vpack.c.b16 %v347, %v346
  %v359 = vpack.c.b16 %v349, %v348
  %v360 = vpack.c.b16 %v351, %v350
  %v361 = vpack.c.b16 %v353, %v352
  %vm362 = vcmask 523264
  %v364 = vsel %vm362, %v354, 0
  %v367 = vsel %vm362, %v355, 0
  %v370 = vsel %vm362, %v356, 0
  %v373 = vsel %vm362, %v357, 0
  %v376 = vsel %vm362, %v358, 0
  %v379 = vsel %vm362, %v359, 0
  %v382 = vsel %vm362, %v360, 0
  %v385 = vsel %vm362, %v361, 0
  %387 = vmatprep.subr.bf16.mxu0 0
  %388 = vmatpush1.bf16.msra.mxu0 %v222
  %389 = vmatprep.subr.bf16.mxu0 0
  %390 = vmatpush1.bf16.msra.mxu0 %v223
  %391 = vmatprep.subr.bf16.mxu0 0
  %392 = vmatpush1.bf16.msra.mxu0 %v224
  %393 = vmatprep.subr.bf16.mxu0 0
  %394 = vmatpush1.bf16.msra.mxu0 %v225
  %395 = vmatprep.subr.bf16.mxu0 0
  %396 = vmatpush1.bf16.msra.mxu0 0
  %397 = vmatprep.subr.bf16.mxu0 0
  %398 = vmatpush1.bf16.msra.mxu0 0
  %399 = vmatprep.subr.bf16.mxu0 0
  %400 = vmatpush1.bf16.msra.mxu0 0
  %401 = vmatprep.subr.bf16.mxu0 0
  %402 = vmatpush1.bf16.msra.mxu0 0
  %403 = vmatprep.subr.bf16.mxu0 0
  %404 = vmatpush1.bf16.msra.mxu0 0
  %405 = vmatprep.subr.bf16.mxu0 0
  %406 = vmatpush1.bf16.msra.mxu0 0
  %407 = vmatprep.subr.bf16.mxu0 0
  %408 = vmatpush1.bf16.msra.mxu0 0
  %409 = vmatprep.subr.bf16.mxu0 0
  %410 = vmatpush1.bf16.msra.mxu0 0
  %411 = vmatprep.subr.bf16.mxu0 0
  %412 = vmatpush1.bf16.msra.mxu0 0
  %413 = vmatprep.subr.bf16.mxu0 0
  %414 = vmatpush1.bf16.msra.mxu0 0
  %415 = vmatprep.subr.bf16.mxu0 0
  %416 = vmatpush1.bf16.msra.mxu0 0
  %417 = vmatprep.subr.bf16.mxu0 0
  %418 = vmatpush1.bf16.msra.mxu0 0
  %419 = vmatprep.mubr.bf16.mxu0 0
  %420 = vmatmul.mubr.bf16.gmra.mrb[0].mxu0 %v364
  %v421 = vpop.f32.mrb[0].mxu0
  %v422 = vadd.f32 %v245, %v421
  %v423 = vpop.f32.mrb[0].mxu0
  %v424 = vpop.f32.mrb[0].mxu0
  %v425 = vadd.f32 %v250, %v424
  %v426 = vpop.f32.mrb[0].mxu0
  %427 = vmatprep.mubr.bf16.mxu0 0
  %428 = vmatmul.mubr.bf16.gmra.mrb[0].mxu0 %v367
  %v429 = vpop.f32.mrb[0].mxu0
  %v430 = vadd.f32 %v255, %v429
  %v431 = vpop.f32.mrb[0].mxu0
  %v432 = vpop.f32.mrb[0].mxu0
  %v433 = vadd.f32 %v260, %v432
  %v434 = vpop.f32.mrb[0].mxu0
  %435 = vmatprep.mubr.bf16.mxu0 0
  %436 = vmatmul.mubr.bf16.gmra.mrb[0].mxu0 %v370
  %v437 = vpop.f32.mrb[0].mxu0
  %v438 = vadd.f32 %v265, %v437
  %v439 = vpop.f32.mrb[0].mxu0
  %v440 = vpop.f32.mrb[0].mxu0
  %v441 = vadd.f32 %v270, %v440
  %v442 = vpop.f32.mrb[0].mxu0
  %443 = vmatprep.mubr.bf16.mxu0 0
  %444 = vmatmul.mubr.bf16.gmra.mrb[0].mxu0 %v373
  %v445 = vpop.f32.mrb[0].mxu0
  %v446 = vadd.f32 %v275, %v445
  %v447 = vpop.f32.mrb[0].mxu0
  %v448 = vpop.f32.mrb[0].mxu0
  %v449 = vadd.f32 %v280, %v448
  %v450 = vpop.f32.mrb[0].mxu0
  %451 = vmatprep.mubr.bf16.mxu0 0
  %452 = vmatmul.mubr.bf16.gmra.mrb[0].mxu0 %v376
  %v453 = vpop.f32.mrb[0].mxu0
  %v454 = vadd.f32 %v285, %v453
  %v455 = vpop.f32.mrb[0].mxu0
  %v456 = vpop.f32.mrb[0].mxu0
  %v457 = vadd.f32 %v290, %v456
  %v458 = vpop.f32.mrb[0].mxu0
  %459 = vmatprep.mubr.bf16.mxu0 0
  %460 = vmatmul.mubr.bf16.gmra.mrb[0].mxu0 %v379
  %v461 = vpop.f32.mrb[0].mxu0
  %v462 = vadd.f32 %v295, %v461
  %v463 = vpop.f32.mrb[0].mxu0
  %v464 = vpop.f32.mrb[0].mxu0
  %v465 = vadd.f32 %v300, %v464
  %v466 = vpop.f32.mrb[0].mxu0
  %467 = vmatprep.mubr.bf16.mxu0 0
  %468 = vmatmul.mubr.bf16.gmra.mrb[0].mxu0 %v382
  %v469 = vpop.f32.mrb[0].mxu0
  %v470 = vadd.f32 %v305, %v469
  %v471 = vpop.f32.mrb[0].mxu0
  %v472 = vpop.f32.mrb[0].mxu0
  %v473 = vadd.f32 %v310, %v472
  %v474 = vpop.f32.mrb[0].mxu0
  %475 = vmatprep.mubr.bf16.mxu0 0
  %476 = vmatmul.mubr.bf16.gmra.mrb[0].mxu0 %v385
  %v477 = vpop.f32.mrb[0].mxu0
  %v478 = vadd.f32 %v315, %v477
  %v479 = vpop.f32.mrb[0].mxu0
  %v480 = vpop.f32.mrb[0].mxu0
  %v481 = vadd.f32 %v320, %v480
  %v482 = vpop.f32.mrb[0].mxu0
  %483 = vdwg.mxu0
  %v484 = vmax.f32 %v422, 0.0
  %v485 = vmax.f32 %v425, 0.0
  %v486 = vmax.f32 %v430, 0.0
  %v487 = vmax.f32 %v433, 0.0
  %v488 = vmax.f32 %v438, 0.0
  %v489 = vmax.f32 %v441, 0.0
  %v490 = vmax.f32 %v446, 0.0
  %v491 = vmax.f32 %v449, 0.0
  %v492 = vmax.f32 %v454, 0.0
  %v493 = vmax.f32 %v457, 0.0
  %v494 = vmax.f32 %v462, 0.0
  %v495 = vmax.f32 %v465, 0.0
  %v496 = vmax.f32 %v470, 0.0
  %v497 = vmax.f32 %v473, 0.0
  %v498 = vmax.f32 %v478, 0.0
  %v499 = vmax.f32 %v481, 0.0
  %v500 = vld [vmem:[%s5] sm:$0xf]
  %v501 = vld [vmem:[%s5 + $0x4] sm:$0xf]
  %v502 = vld [vmem:[%s5 + $0x8] sm:$0xf]
  %v503 = vld [vmem:[%s5 + $0xc] sm:$0xf]
  %v504 = vld [vmem:[%s5 + $0x10] sm:$0xf]
  %v505 = vld [vmem:[%s5 + $0x14] sm:$0xf]
  %v506 = vld [vmem:[%s5 + $0x18] sm:$0xf]
  %v507 = vld [vmem:[%s5 + $0x1c] sm:$0xf]
  %v508 = vpack.c.bf16 %v485, %v484
  %v509 = vpack.c.bf16 %v487, %v486
  %v510 = vpack.c.bf16 %v489, %v488
  %v511 = vpack.c.bf16 %v491, %v490
  %v512 = vpack.c.bf16 %v493, %v492
  %v513 = vpack.c.bf16 %v495, %v494
  %v514 = vpack.c.bf16 %v497, %v496
  %v515 = vpack.c.bf16 %v499, %v498
  %v516 = vld [vmem:[%s6] sm:$0xff]
  %v517 = vld [vmem:[%s6 + $0x8] sm:$0xff]
  %v518 = vld [vmem:[%s6 + $0x10] sm:$0xff]
  %v519 = vld [vmem:[%s6 + $0x18] sm:$0xff]
  %v520 = vld [vmem:[%s6 + $0x20] sm:$0xff]
  %v521 = vld [vmem:[%s6 + $0x28] sm:$0xff]
  %v522 = vld [vmem:[%s6 + $0x30] sm:$0xff]
  %v523 = vld [vmem:[%s6 + $0x38] sm:$0xff]
  %525 = vset.pattern.permute.xlu0 0
  %526 = vperm.xlu0 %525, %v516
  %v527 = vpop.permute.xlu0 %526
  %530 = vset.pattern.permute.xlu0 0
  %531 = vperm.xlu0 %530, %v517
  %v532 = vpop.permute.xlu0 %531
  %535 = vset.pattern.permute.xlu0 0
  %536 = vperm.xlu0 %535, %v518
  %v537 = vpop.permute.xlu0 %536
  %540 = vset.pattern.permute.xlu0 0
  %541 = vperm.xlu0 %540, %v519
  %v542 = vpop.permute.xlu0 %541
  %545 = vset.pattern.permute.xlu0 0
  %546 = vperm.xlu0 %545, %v520
  %v547 = vpop.permute.xlu0 %546
  %550 = vset.pattern.permute.xlu0 0
  %551 = vperm.xlu0 %550, %v521
  %v552 = vpop.permute.xlu0 %551
  %555 = vset.pattern.permute.xlu0 0
  %556 = vperm.xlu0 %555, %v522
  %v557 = vpop.permute.xlu0 %556
  %560 = vset.pattern.permute.xlu0 0
  %561 = vperm.xlu0 %560, %v523
  %v562 = vpop.permute.xlu0 %561
  %v572 = vunpack.c.l.b16 %v500
  %v573 = vunpack.c.l.b16 %v501
  %v574 = vunpack.c.l.b16 %v502
  %v575 = vunpack.c.l.b16 %v503
  %v576 = vunpack.c.l.b16 %v504
  %v577 = vunpack.c.l.b16 %v505
  %v578 = vunpack.c.l.b16 %v506
  %v579 = vunpack.c.l.b16 %v507
  %v580 = vpack.c.b16 %v573, %v572
  %v581 = vpack.c.b16 %v575, %v574
  %v582 = vpack.c.b16 %v577, %v576
  %v583 = vpack.c.b16 %v579, %v578
  %588 = vmatprep.subr.bf16.mxu0 0
  %589 = vmatpush1.bf16.msra.mxu0 %v508
  %590 = vmatprep.subr.bf16.mxu0 0
  %591 = vmatpush1.bf16.msra.mxu0 %v509
  %592 = vmatprep.subr.bf16.mxu0 0
  %593 = vmatpush1.bf16.msra.mxu0 %v510
  %594 = vmatprep.subr.bf16.mxu0 0
  %595 = vmatpush1.bf16.msra.mxu0 %v511
  %596 = vmatprep.subr.bf16.mxu0 0
  %597 = vmatpush1.bf16.msra.mxu0 %v512
  %598 = vmatprep.subr.bf16.mxu0 0
  %599 = vmatpush1.bf16.msra.mxu0 %v513
  %600 = vmatprep.subr.bf16.mxu0 0
  %601 = vmatpush1.bf16.msra.mxu0 %v514
  %602 = vmatprep.subr.bf16.mxu0 0
  %603 = vmatpush1.bf16.msra.mxu0 %v515
  %604 = vmatprep.subr.bf16.mxu0 0
  %605 = vmatpush1.bf16.msra.mxu0 0
  %606 = vmatprep.subr.bf16.mxu0 0
  %607 = vmatpush1.bf16.msra.mxu0 0
  %608 = vmatprep.subr.bf16.mxu0 0
  %609 = vmatpush1.bf16.msra.mxu0 0
  %610 = vmatprep.subr.bf16.mxu0 0
  %611 = vmatpush1.bf16.msra.mxu0 0
  %612 = vmatprep.subr.bf16.mxu0 0
  %613 = vmatpush1.bf16.msra.mxu0 0
  %614 = vmatprep.subr.bf16.mxu0 0
  %615 = vmatpush1.bf16.msra.mxu0 0
  %616 = vmatprep.subr.bf16.mxu0 0
  %617 = vmatpush1.bf16.msra.mxu0 0
  %618 = vmatprep.subr.bf16.mxu0 0
  %619 = vmatpush1.bf16.msra.mxu0 0
  %620 = vmatprep.mubr.bf16.mxu0 0
  %621 = vmatmul.mubr.bf16.gmra.mrb[0].mxu0 %v580
  %v622 = vpop.f32.mrb[0].mxu0
  %v623 = vadd.f32 %v527, %v622
  %v624 = vpop.f32.mrb[0].mxu0
  %v625 = vpop.f32.mrb[0].mxu0
  %v626 = vadd.f32 %v532, %v625
  %v627 = vpop.f32.mrb[0].mxu0
  %628 = vmatprep.mubr.bf16.mxu0 0
  %629 = vmatmul.mubr.bf16.gmra.mrb[0].mxu0 %v581
  %v630 = vpop.f32.mrb[0].mxu0
  %v631 = vadd.f32 %v537, %v630
  %v632 = vpop.f32.mrb[0].mxu0
  %v633 = vpop.f32.mrb[0].mxu0
  %v634 = vadd.f32 %v542, %v633
  %v635 = vpop.f32.mrb[0].mxu0
  %636 = vmatprep.mubr.bf16.mxu0 0
  %637 = vmatmul.mubr.bf16.gmra.mrb[0].mxu0 %v582
  %v638 = vpop.f32.mrb[0].mxu0
  %v639 = vadd.f32 %v547, %v638
  %v640 = vpop.f32.mrb[0].mxu0
  %v641 = vpop.f32.mrb[0].mxu0
  %v642 = vadd.f32 %v552, %v641
  %v643 = vpop.f32.mrb[0].mxu0
  %644 = vmatprep.mubr.bf16.mxu0 0
  %645 = vmatmul.mubr.bf16.gmra.mrb[0].mxu0 %v583
  %v646 = vpop.f32.mrb[0].mxu0
  %v647 = vadd.f32 %v557, %v646
  %v648 = vpop.f32.mrb[0].mxu0
  %v649 = vpop.f32.mrb[0].mxu0
  %v650 = vadd.f32 %v562, %v649
  %v651 = vpop.f32.mrb[0].mxu0
  %652 = vdwg.mxu0
  %v653 = vmax.f32 %v623, 0.0
  %v654 = vmax.f32 %v626, 0.0
  %v655 = vmax.f32 %v631, 0.0
  %v656 = vmax.f32 %v634, 0.0
  %v657 = vmax.f32 %v639, 0.0
  %v658 = vmax.f32 %v642, 0.0
  %v659 = vmax.f32 %v647, 0.0
  %v660 = vmax.f32 %v650, 0.0
  %v661 = vld [vmem:[%s7] sm:$0x1]
  %v662 = vpack.c.bf16 %v654, %v653
  %v663 = vpack.c.bf16 %v656, %v655
  %v664 = vpack.c.bf16 %v658, %v657
  %v665 = vpack.c.bf16 %v660, %v659
  %v666 = vld [vmem:[#allocation2] sm:$0x1]
  %668 = vset.pattern.permute.xlu0 0
  %669 = vperm.xlu0 %668, %v666
  %v670 = vpop.permute.xlu0 %669
  %v672 = vlaneseq
  %v673 = vshrl.u32 %v672, 7
  %v674 = vsub.s32 0, %v673
  %v675 = vrot.slane %v670, %v674
  %v677 = vsel %vm362, %v661, 0
  %679 = vmatprep.subr.bf16.mxu0 0
  %680 = vmatpush1.bf16.msra.mxu0 %v662
  %681 = vmatprep.subr.bf16.mxu0 0
  %682 = vmatpush1.bf16.msra.mxu0 %v663
  %683 = vmatprep.subr.bf16.mxu0 0
  %684 = vmatpush1.bf16.msra.mxu0 %v664
  %685 = vmatprep.subr.bf16.mxu0 0
  %686 = vmatpush1.bf16.msra.mxu0 %v665
  %687 = vmatprep.subr.bf16.mxu0 0
  %688 = vmatpush1.bf16.msra.mxu0 0
  %689 = vmatprep.subr.bf16.mxu0 0
  %690 = vmatpush1.bf16.msra.mxu0 0
  %691 = vmatprep.subr.bf16.mxu0 0
  %692 = vmatpush1.bf16.msra.mxu0 0
  %693 = vmatprep.subr.bf16.mxu0 0
  %694 = vmatpush1.bf16.msra.mxu0 0
  %695 = vmatprep.subr.bf16.mxu0 0
  %696 = vmatpush1.bf16.msra.mxu0 0
  %697 = vmatprep.subr.bf16.mxu0 0
  %698 = vmatpush1.bf16.msra.mxu0 0
  %699 = vmatprep.subr.bf16.mxu0 0
  %700 = vmatpush1.bf16.msra.mxu0 0
  %701 = vmatprep.subr.bf16.mxu0 0
  %702 = vmatpush1.bf16.msra.mxu0 0
  %703 = vmatprep.subr.bf16.mxu0 0
  %704 = vmatpush1.bf16.msra.mxu0 0
  %705 = vmatprep.subr.bf16.mxu0 0
  %706 = vmatpush1.bf16.msra.mxu0 0
  %707 = vmatprep.subr.bf16.mxu0 0
  %708 = vmatpush1.bf16.msra.mxu0 0
  %709 = vmatprep.subr.bf16.mxu0 0
  %710 = vmatpush1.bf16.msra.mxu0 0
  %711 = vmatprep.mubr.bf16.mxu0 0
  %712 = vmatmul.mubr.bf16.gmra.mrb[0].mxu0 %v677
  %v713 = vpop.f32.mrb[0].mxu0
  %v714 = vadd.f32 %v675, %v713
  %v715 = vpop.f32.mrb[0].mxu0
  %v716 = vpop.f32.mrb[0].mxu0
  %v717 = vpop.f32.mrb[0].mxu0
  %718 = vdwg.mxu0
  %719 = vst [vmem:[%s9] sm:$0x1] %v714
  // Predicated region
  $region38: #{critic_forward.1} parent=0 // pred_check
    _
  $region39: #{critic_forward.1} parent=0 // pred_check_branch
    %721 = sbr.rel (0) target = $region41
  $region40: #{critic_forward.1} parent=0 // pred_region
    _
  $region41: #{critic_forward.1} parent=0 // pred_fallthru
    _
  // Predicated region
  $region42: #{critic_forward.1} parent=0 // pred_check
    _
  $region43: #{critic_forward.1} parent=0 // pred_check_branch
    %723 = sbr.rel (0) target = $region45
  $region44: #{critic_forward.1} parent=0 // pred_region
    _
  $region45: #{critic_forward.1} parent=0 // pred_fallthru
    _

</llo_original>
